<compile_context>
chip_gen: v5e
topology: v5e:2x2
jax: 0.10.0
libtpu: 0.0.40
codegen_flags: <defaults>
</compile_context>

<pallas_src>
import functools

import jax
import jax.numpy as jnp
from jax import lax
from jax.experimental import pallas as pl
from jax.experimental.pallas import tpu as pltpu


# ----------------------------------------------------------------------------
# Generation-aware VMEM budgets
# ----------------------------------------------------------------------------
def _vmem_capacity_bytes():
    """Physical VMEM per core; conservative 64 MiB fallback (safe on v7x)."""
    default = 64 * 1024 * 1024
    try:
        info = pltpu.get_tpu_info()
        cap = int(getattr(info, "vmem_capacity_bytes", 0) or 0)
        return cap if cap > 0 else default
    except Exception:
        return default


def _vmem_budgets():
    cap = _vmem_capacity_bytes()
    limit = (3 * cap) // 4        # 128 MiB -> 96 MiB (v5e/v6e), 64 MiB -> 48 MiB (v7x)
    budget = (2 * limit) // 3     # 96 -> 64 MiB,               48 -> 32 MiB
    return limit, budget


# ----------------------------------------------------------------------------
# Tile selection
# ----------------------------------------------------------------------------
def _sublane_align(itemsize):
    # 8 for 4-byte dtypes, 16 for 2-byte, 32 for 1-byte (sublane packing).
    return max(8, 32 // max(1, int(itemsize)))


def _divisors_desc(n):
    return [d for d in range(n, 0, -1) if n % d == 0]


def _tq_candidates(lq, itemsize, cap=None):
    cap = 1024 if cap is None else int(cap)
    align = _sublane_align(itemsize)
    top = min(lq, cap)
    cands = []
    if lq <= cap:
        cands.append(lq)                       # full dim always satisfies layout rules
    for t in range(top, 0, -1):
        if lq % t == 0 and t % align == 0 and t not in cands:
            cands.append(t)
    for t in range(top, 0, -1):
        if lq % t == 0 and t % 8 == 0 and t not in cands:
            cands.append(t)
    if not cands:
        cands = [lq]                           # last resort: full dim
    return cands


def _tk_candidates(lk, cap=None):
    cap = 512 if cap is None else int(cap)
    top = min(lk, cap)
    cands = []
    for t in range(top, 0, -1):                # lane-dense (multiple of 128) preferred
        if lk % t == 0 and t % 128 == 0 and t not in cands:
            cands.append(t)
    if lk <= cap and lk not in cands:
        cands.append(lk)
    for t in range(top, 0, -1):
        if lk % t == 0 and t % 8 == 0 and t not in cands:
            cands.append(t)
    if not cands:
        cands = [lk]
    return cands


def _step_bytes_attn(g, tq, lk, d, qkv_isz, out_isz, attn_isz):
    # Double-buffered input / output blocks.
    inputs = 2 * g * (tq * d + 2 * lk * d) * qkv_isz
    outputs = 2 * g * (tq * d * out_isz + tq * lk * attn_isz)
    # Per-head f32 temporaries (scores / exp / probs / f32 out) + cast copies.
    # These do NOT scale with g because the kernel loops over heads.
    scratch = (3 * tq * lk + tq * d) * 4 + tq * lk * qkv_isz + tq * d * out_isz
    return inputs + outputs + scratch


def _step_bytes_flash(g, tq, tk, d, qkv_isz, out_isz):
    inputs = 2 * g * (tq * d + 2 * tk * d) * qkv_isz
    outputs = 2 * g * tq * d * out_isz
    accs = g * (tq * d + 2 * tq) * 4                                # acc, m_i, l_i
    temps = g * ((3 * tq * tk + 2 * tq * d) * 4 + tq * tk * qkv_isz)
    return inputs + outputs + accs + temps


def _pick_attn_tiles(bh, lq, lk, d, qkv_isz, out_isz, attn_isz, budget, block_q):
    g_cands = _divisors_desc(bh)
    tq_cands = _tq_candidates(lq, qkv_isz, block_q)
    for tq in tq_cands:                                  # shrink TQ if G=1 won't fit
        for g in g_cands:
            if _step_bytes_attn(g, tq, lk, d, qkv_isz, out_isz, attn_isz) <= budget:
                return g, tq
    return 1, tq_cands[-1]                               # best effort


def _pick_flash_tiles(bh, lq, lk, d, qkv_isz, out_isz, budget, block_q, block_kv):
    g_cands = _divisors_desc(bh)
    tq_cands = _tq_candidates(lq, qkv_isz, block_q)      # TQ first: sets K/V HBM traffic
    tk_cands = _tk_candidates(lk, block_kv)
    for tq in tq_cands:
        for tk in tk_cands:
            for g in g_cands:
                if _step_bytes_flash(g, tq, tk, d, qkv_isz, out_isz) <= budget:
                    return g, tq, tk
    return 1, tq_cands[-1], tk_cands[-1]                 # best effort


# ----------------------------------------------------------------------------
# Kernels
# ----------------------------------------------------------------------------
def _attn_kernel(q_ref, k_ref, v_ref, o_ref, attn_ref, *, scale, g_heads):
    """Materialized-softmax path; loops over heads so f32 temps are O(TQ*Lk)."""

    def one_head(g, carry):
        q = q_ref[g] * scale                      # (TQ, D), native dtype, scale folded
        k = k_ref[g]                              # (Lk, D)
        v = v_ref[g]                              # (Lk, D)
        scores = lax.dot_general(                 # (TQ, Lk), f32 accumulation on MXU
            q, k, (((1,), (1,)), ((), ())),
            preferred_element_type=jnp.float32)
        m = jnp.max(scores, axis=-1, keepdims=True)
        e = jnp.exp(scores - m)
        denom = jnp.sum(e, axis=-1, keepdims=True)
        r = pl.reciprocal(denom, approx=True)     # EUP slot, nearly free
        r = r * (2.0 - denom * r)                 # one Newton step -> f32 accurate
        probs = e * r
        out = jnp.dot(probs.astype(v.dtype), v,   # (TQ, D)
                      preferred_element_type=jnp.float32)
        o_ref[g] = out.astype(o_ref.dtype)
        attn_ref[g] = probs.astype(attn_ref.dtype)
        return carry

    lax.fori_loop(0, g_heads, one_head, 0, unroll=g_heads <= 2)


def _flash_kernel(q_ref, k_ref, v_ref, o_ref, m_sc, l_sc, acc_sc, *, scale):
    """Online-softmax path (return_attn=False); Lk is the innermost grid axis."""
    ki = pl.program_id(2)

    @pl.when(ki == 0)
    def _():
        m_sc[...] = jnp.full_like(m_sc, -jnp.inf)
        l_sc[...] = jnp.zeros_like(l_sc)
        acc_sc[...] = jnp.zeros_like(acc_sc)

    q = q_ref[...] * scale                        # (G, TQ, D), resident across ki
    s = lax.dot_general(                          # (G, TQ, TK) f32
        q, k_ref[...], (((2,), (2,)), ((0,), (0,))),
        preferred_element_type=jnp.float32)

    m_prev = m_sc[...]
    m_new = jnp.maximum(m_prev, jnp.max(s, axis=-1, keepdims=True))
    alpha = jnp.exp(m_prev - m_new)
    p = jnp.exp(s - m_new)
    l_sc[...] = alpha * l_sc[...] + jnp.sum(p, axis=-1, keepdims=True)
    pv = lax.dot_general(                         # (G, TQ, D) f32
        p.astype(v_ref.dtype), v_ref[...], (((2,), (1,)), ((0,), (0,))),
        preferred_element_type=jnp.float32)
    acc_sc[...] = alpha * acc_sc[...] + pv
    m_sc[...] = m_new

    @pl.when(ki == pl.num_programs(2) - 1)
    def _():
        l = l_sc[...]
        r = pl.reciprocal(l, approx=True)
        r = r * (2.0 - l * r)
        o_ref[...] = (acc_sc[...] * r).astype(o_ref.dtype)


# ----------------------------------------------------------------------------
# Wrapper
# ----------------------------------------------------------------------------
def scaled_dot_product_attention(q, k, v, temperature, *, tau=None,
                                 query_pos=None, key_pos=None,
                                 return_attn=True, attn_dtype=None,
                                 block_q=None, block_kv=None):
    """Eval-mode forward of ScaledDotProductAttention.

    q: [B, H, Lq, D]; k, v: [B, H, Lk, D].
    return_attn=True  -> (output [B,H,Lq,D], attn [B,H,Lq,Lk])
    return_attn=False -> output only (flash-style, no Lq*Lk HBM writeback)
    Attention weights are stored in `attn_dtype` (default: q.dtype).
    """
    # TODO(synk): mask (bool -inf fill / additive float), training-mode
    # attn_dropout / gumbel_softmax, out_proj Linear, out_dropout and
    # out_residual are not implemented (module defaults / eval mode make them
    # identity here).
    if query_pos is not None:
        q = q + query_pos
    if key_pos is not None:
        k = k + key_pos

    B, H, Lq, D = q.shape
    Lk = k.shape[2]
    BH = B * H

    scale = 1.0 / float(temperature)
    if tau is not None:
        scale /= float(tau)

    qf = q.reshape(BH, Lq, D)
    kf = k.reshape(BH, Lk, D)
    vf = v.reshape(BH, Lk, D)

    qkv_isz = jnp.dtype(q.dtype).itemsize
    out_dtype = q.dtype
    out_isz = jnp.dtype(out_dtype).itemsize
    attn_dtype = jnp.dtype(q.dtype) if attn_dtype is None else jnp.dtype(attn_dtype)
    attn_isz = attn_dtype.itemsize

    vmem_limit, vmem_budget = _vmem_budgets()

    cost = pl.CostEstimate(
        flops=4 * BH * Lq * Lk * D,
        transcendentals=BH * Lq * Lk,
        bytes_accessed=((BH * Lq * D + 2 * BH * Lk * D) * qkv_isz
                        + BH * Lq * D * out_isz
                        + (BH * Lq * Lk * attn_isz if return_attn else 0)),
    )

    if return_attn:
        G, TQ = _pick_attn_tiles(BH, Lq, Lk, D, qkv_isz, out_isz, attn_isz,
                                 vmem_budget, block_q)
        grid = (BH // G, Lq // TQ)
        # v7x megacore: split the head-group axis (never duplicates K/V DMA);
        # with a single g-step, let the query-tile axis be split instead.
        dim_sem = ("parallel", "arbitrary") if grid[0] >= 2 else ("parallel", "parallel")
        kernel = functools.partial(_attn_kernel, scale=scale, g_heads=G)
        out, attn = pl.pallas_call(
            kernel,
            out_shape=(jax.ShapeDtypeStruct((BH, Lq, D), out_dtype),
                       jax.ShapeDtypeStruct((BH, Lq, Lk), attn_dtype)),
            grid_spec=pltpu.PrefetchScalarGridSpec(
                num_scalar_prefetch=0,
                grid=grid,
                in_specs=[
                    pl.BlockSpec((G, TQ, D), lambda g, qi: (g, qi, 0)),
                    # K / V blocks do not depend on qi -> resident across the
                    # query-tile axis (each head's K/V is DMA'd exactly once).
                    pl.BlockSpec((G, Lk, D), lambda g, qi: (g, 0, 0)),
                    pl.BlockSpec((G, Lk, D), lambda g, qi: (g, 0, 0)),
                ],
                out_specs=[
                    pl.BlockSpec((G, TQ, D), lambda g, qi: (g, qi, 0)),
                    pl.BlockSpec((G, TQ, Lk), lambda g, qi: (g, qi, 0)),
                ],
            ),
            compiler_params=pltpu.CompilerParams(
                dimension_semantics=dim_sem,
                vmem_limit_bytes=vmem_limit,
            ),
            cost_estimate=cost,
        )(qf, kf, vf)
        return out.reshape(B, H, Lq, D), attn.reshape(B, H, Lq, Lk)

    # return_attn=False: flash-style online softmax over an Lk grid axis.
    G, TQ, TK = _pick_flash_tiles(BH, Lq, Lk, D, qkv_isz, out_isz,
                                  vmem_budget, block_q, block_kv)
    grid = (BH // G, Lq // TQ, Lk // TK)
    dim_sem = (("parallel", "arbitrary", "arbitrary") if grid[0] >= 2
               else ("parallel", "parallel", "arbitrary"))
    kernel = functools.partial(_flash_kernel, scale=scale)
    out = pl.pallas_call(
        kernel,
        out_shape=jax.ShapeDtypeStruct((BH, Lq, D), out_dtype),
        grid_spec=pltpu.PrefetchScalarGridSpec(
            num_scalar_prefetch=0,
            grid=grid,
            in_specs=[
                pl.BlockSpec((G, TQ, D), lambda g, qi, ki: (g, qi, 0)),
                pl.BlockSpec((G, TK, D), lambda g, qi, ki: (g, ki, 0)),
                pl.BlockSpec((G, TK, D), lambda g, qi, ki: (g, ki, 0)),
            ],
            out_specs=pl.BlockSpec((G, TQ, D), lambda g, qi, ki: (g, qi, 0)),
            scratch_shapes=[
                pltpu.VMEM((G, TQ, 1), jnp.float32),   # running max
                pltpu.VMEM((G, TQ, 1), jnp.float32),   # running denominator
                pltpu.VMEM((G, TQ, D), jnp.float32),   # running numerator
            ],
        ),
        compiler_params=pltpu.CompilerParams(
            dimension_semantics=dim_sem,
            vmem_limit_bytes=vmem_limit,
        ),
        cost_estimate=cost,
    )(qf, kf, vf)
    return out.reshape(B, H, Lq, D)


# ----------------------------------------------------------------------------
# Reference + self-test
# ----------------------------------------------------------------------------
def _reference(q, k, v, temperature):
    attn = jnp.matmul(q / temperature, jnp.swapaxes(k, 2, 3))
    m = jax.nn.softmax(attn, axis=-1)
    return jnp.matmul(m, v), m


if __name__ == "__main__":
    key = jax.random.PRNGKey(0)
    k1, k2, k3, k4, k5, k6 = jax.random.split(key, 6)

    # Case 1: small shapes consistent with the module's 4-D attention convention.
    B, H, Lq, Lk, D = 2, 4, 8, 8, 32
    temperature = float(D) ** 0.5
    q = jax.random.normal(k1, (B, H, Lq, D), dtype=jnp.float32)
    k = jax.random.normal(k2, (B, H, Lk, D), dtype=jnp.float32)
    v = jax.random.normal(k3, (B, H, Lk, D), dtype=jnp.float32)

    out, attn = scaled_dot_product_attention(q, k, v, temperature)
    out = jax.block_until_ready(out)
    attn = jax.block_until_ready(attn)
    ref_out, ref_attn = _reference(q, k, v, temperature)
    assert jnp.allclose(out, ref_out, atol=1e-4, rtol=1e-4), "output mismatch"
    assert jnp.allclose(attn, ref_attn, atol=1e-4, rtol=1e-4), "attn mismatch"

    out_only = scaled_dot_product_attention(q, k, v, temperature, return_attn=False)
    out_only = jax.block_until_ready(out_only)
    assert jnp.allclose(out_only, ref_out, atol=1e-4, rtol=1e-4), "output-only mismatch"

    # Case 2: exercise multi-step grids (query tiling + online-softmax Lk axis)
    # while keeping the problem small.
    B2, H2, Lq2, Lk2, D2 = 1, 2, 128, 256, 32
    temperature2 = float(D2) ** 0.5
    q2 = jax.random.normal(k4, (B2, H2, Lq2, D2), dtype=jnp.float32)
    k2_ = jax.random.normal(k5, (B2, H2, Lk2, D2), dtype=jnp.float32)
    v2 = jax.random.normal(k6, (B2, H2, Lk2, D2), dtype=jnp.float32)
    ref_out2, ref_attn2 = _reference(q2, k2_, v2, temperature2)

    out2, attn2 = scaled_dot_product_attention(q2, k2_, v2, temperature2, block_q=64)
    out2 = jax.block_until_ready(out2)
    assert jnp.allclose(out2, ref_out2, atol=1e-4, rtol=1e-4), "tiled output mismatch"
    assert jnp.allclose(attn2, ref_attn2, atol=1e-4, rtol=1e-4), "tiled attn mismatch"

    out2_only = scaled_dot_product_attention(q2, k2_, v2, temperature2,
                                             return_attn=False,
                                             block_q=64, block_kv=128)
    out2_only = jax.block_until_ready(out2_only)
    assert jnp.allclose(out2_only, ref_out2, atol=1e-4, rtol=1e-4), "flash output mismatch"

    print("KERNEL_OK")
</pallas_src>

<mosaic_0001>
module attributes {stable_mosaic.version = 11 : i64} {
  func.func @_attn_kernel(%arg0: i32, %arg1: i32, %arg2: memref<8x8x32xf32, #tpu.memory_space<vmem>>, %arg3: memref<8x8x32xf32, #tpu.memory_space<vmem>>, %arg4: memref<8x8x32xf32, #tpu.memory_space<vmem>>, %arg5: memref<8x8x32xf32, #tpu.memory_space<vmem>>, %arg6: memref<8x8x8xf32, #tpu.memory_space<vmem>>) attributes {dimension_semantics = [#tpu.dimension_semantics<parallel>, #tpu.dimension_semantics<parallel>], iteration_bounds = array<i64: 1, 1>, scalar_prefetch = 0 : i64, scratch_operands = 0 : i64, tpu.core_type = #tpu.core_type<tc>, window_params = [{transform_indices = @transform_0, window_bounds = array<i64: 8, 8, 32>}, {transform_indices = @transform_1, window_bounds = array<i64: 8, 8, 32>}, {transform_indices = @transform_2, window_bounds = array<i64: 8, 8, 32>}, {transform_indices = @transform_3, window_bounds = array<i64: 8, 8, 32>}, {transform_indices = @transform_4, window_bounds = array<i64: 8, 8, 8>}]} {
    %c0_i32 = arith.constant 0 : i32
    %c8_i32 = arith.constant 8 : i32
    %0 = arith.addi %c0_i32, %c8_i32 : i32
    %c1_i32 = arith.constant 1 : i32
    scf.for %arg7 = %c0_i32 to %0 step %c1_i32  : i32 {
      %1 = arith.index_cast %arg7 : i32 to index
      %c0 = arith.constant 0 : index
      %c0_1 = arith.constant 0 : index
      %2 = vector.load %arg2[%1, %c0, %c0_1] : memref<8x8x32xf32, #tpu.memory_space<vmem>>, vector<1x8x32xf32>
      %3 = vector.shape_cast %2 : vector<1x8x32xf32> to vector<8x32xf32>
      %cst = arith.constant 0.176776692 : f32
      %4 = vector.broadcast %cst : f32 to vector<8x32xf32>
      %5 = arith.mulf %3, %4 : vector<8x32xf32>
      %6 = arith.index_cast %arg7 : i32 to index
      %c0_2 = arith.constant 0 : index
      %c0_3 = arith.constant 0 : index
      %7 = vector.load %arg3[%6, %c0_2, %c0_3] : memref<8x8x32xf32, #tpu.memory_space<vmem>>, vector<1x8x32xf32>
      %8 = vector.shape_cast %7 : vector<1x8x32xf32> to vector<8x32xf32>
      %9 = arith.index_cast %arg7 : i32 to index
      %c0_4 = arith.constant 0 : index
      %c0_5 = arith.constant 0 : index
      %10 = vector.load %arg4[%9, %c0_4, %c0_5] : memref<8x8x32xf32, #tpu.memory_space<vmem>>, vector<1x8x32xf32>
      %11 = vector.shape_cast %10 : vector<1x8x32xf32> to vector<8x32xf32>
      %cst_6 = arith.constant dense<0.000000e+00> : vector<8x8xf32>
      %12 = tpu.matmul %5, %8, %cst_6 {dimension_numbers = #tpu.dot_dimension_numbers<[1], [1], [0], [0], [0, 0, 1, 0], [], []>} : vector<8x32xf32>, vector<8x32xf32>, vector<8x8xf32> -> vector<8x8xf32>
      %cst_7 = arith.constant dense<0xFF800000> : vector<8xf32>
      %13 = vector.multi_reduction <maximumf>, %12, %cst_7 [1] : vector<8x8xf32> to vector<8xf32>
      %14 = vector.shape_cast %13 : vector<8xf32> to vector<8x1xf32>
      %15 = vector.broadcast %14 : vector<8x1xf32> to vector<8x8xf32>
      %16 = arith.subf %12, %15 : vector<8x8xf32>
      %17 = math.exp %16 : vector<8x8xf32>
      %cst_8 = arith.constant dense<0.000000e+00> : vector<8xf32>
      %18 = vector.multi_reduction <add>, %17, %cst_8 [1] : vector<8x8xf32> to vector<8xf32>
      %19 = vector.shape_cast %18 : vector<8xf32> to vector<8x1xf32>
      %20 = tpu.reciprocal %19 {approx = true} : vector<8x1xf32> -> vector<8x1xf32>
      %21 = arith.mulf %19, %20 : vector<8x1xf32>
      %cst_9 = arith.constant 2.000000e+00 : f32
      %22 = vector.broadcast %cst_9 : f32 to vector<8x1xf32>
      %23 = arith.subf %22, %21 : vector<8x1xf32>
      %24 = arith.mulf %20, %23 : vector<8x1xf32>
      %25 = vector.broadcast %24 : vector<8x1xf32> to vector<8x8xf32>
      %26 = arith.mulf %17, %25 : vector<8x8xf32>
      %cst_10 = arith.constant dense<0.000000e+00> : vector<8x32xf32>
      %27 = tpu.matmul %26, %11, %cst_10 {dimension_numbers = #tpu.dot_dimension_numbers<[1], [0], [0], [1], [0, 0, 1, 1], [], []>} : vector<8x8xf32>, vector<8x32xf32>, vector<8x32xf32> -> vector<8x32xf32>
      %28 = arith.index_cast %arg7 : i32 to index
      %c0_11 = arith.constant 0 : index
      %c0_12 = arith.constant 0 : index
      %29 = vector.load %arg5[%28, %c0_11, %c0_12] : memref<8x8x32xf32, #tpu.memory_space<vmem>>, vector<1x8x32xf32>
      %30 = vector.shape_cast %29 : vector<1x8x32xf32> to vector<8x32xf32>
      %31 = vector.shape_cast %27 : vector<8x32xf32> to vector<1x8x32xf32>
      tpu.vector_store %arg5[%28, %c0_11, %c0_12], %31 {strides = array<i32>} : memref<8x8x32xf32, #tpu.memory_space<vmem>>, vector<1x8x32xf32>,
      %32 = arith.index_cast %arg7 : i32 to index
      %c0_13 = arith.constant 0 : index
      %c0_14 = arith.constant 0 : index
      %33 = vector.load %arg6[%32, %c0_13, %c0_14] : memref<8x8x8xf32, #tpu.memory_space<vmem>>, vector<1x8x8xf32>
      %34 = vector.shape_cast %33 : vector<1x8x8xf32> to vector<8x8xf32>
      %35 = vector.shape_cast %26 : vector<8x8xf32> to vector<1x8x8xf32>
      tpu.vector_store %arg6[%32, %c0_13, %c0_14], %35 {strides = array<i32>} : memref<8x8x8xf32, #tpu.memory_space<vmem>>, vector<1x8x8xf32>,
    }
    %c8_i32_0 = arith.constant 8 : i32
    return
  }
  func.func @transform_0(%arg0: i32, %arg1: i32) -> (i32, i32, i32) {
    %c0_i32 = arith.constant 0 : i32
    %c0_i32_0 = arith.constant 0 : i32
    return %arg0, %arg1, %c0_i32 : i32, i32, i32
  }
  func.func @transform_1(%arg0: i32, %arg1: i32) -> (i32, i32, i32) {
    %c0_i32 = arith.constant 0 : i32
    %c0_i32_0 = arith.constant 0 : i32
    %c0_i32_1 = arith.constant 0 : i32
    return %arg0, %c0_i32, %c0_i32_0 : i32, i32, i32
  }
  func.func @transform_2(%arg0: i32, %arg1: i32) -> (i32, i32, i32) {
    %c0_i32 = arith.constant 0 : i32
    %c0_i32_0 = arith.constant 0 : i32
    %c0_i32_1 = arith.constant 0 : i32
    return %arg0, %c0_i32, %c0_i32_0 : i32, i32, i32
  }
  func.func @transform_3(%arg0: i32, %arg1: i32) -> (i32, i32, i32) {
    %c0_i32 = arith.constant 0 : i32
    %c0_i32_0 = arith.constant 0 : i32
    return %arg0, %arg1, %c0_i32 : i32, i32, i32
  }
  func.func @transform_4(%arg0: i32, %arg1: i32) -> (i32, i32, i32) {
    %c0_i32 = arith.constant 0 : i32
    %c0_i32_0 = arith.constant 0 : i32
    return %arg0, %arg1, %c0_i32 : i32, i32, i32
  }
}

</mosaic_0001>

<llo_original>
// kernel: tpu_custom_call.1
$region0: #{tpu_custom_call.1}
  #allocation0 [shape = 'u32[]', space=smem, size = 0x4, offset = 0x4, fixed_abs, tag = 'smem constant byte address 0x4 - core index']
  #allocation1 [shape = 'u32[72,128]{1,0:T(1,128)}', space=vmem, size = 0x9000, scoped, tag = 'internal scratch']
  %s0 = inlined_call_operand.hbm [shape: f32[8,8,32], index: 0, kind: input, shape index: {}]
  %s1 = inlined_call_operand.hbm [shape: f32[8,8,32], index: 1, kind: input, shape index: {}]
  %s2 = inlined_call_operand.hbm [shape: f32[8,8,32], index: 2, kind: input, shape index: {}]
  %s3 = inlined_call_operand.hbm [shape: f32[8,8,32], index: 3, kind: output, shape index: {0}]
  %s4 = inlined_call_operand.hbm [shape: f32[8,8,8], index: 4, kind: output, shape index: {1}]
  %5 = xla_tuple %s3, %s4
  %s6 = sld [smem:[#allocation0]]
  $region49: #{tpu_custom_call.1} parent=0
    _
  %s8 = ssub.s32 1, %s6
  %s9 = scalar_select 0, %s8, %s6
  $region1: #{tpu_custom_call.1} parent=0
    #allocation2 [shape = 'u8[32768]{0}', space=vmem, size = 0x8000, scoped, tag = 'input window, operand 0, single buffered']
    #allocation3 [shape = 's32[1]{0}', space=sflag, size = 0x4, scoped, tag = 'scoped memory for tpu_custom_call.1']
    #allocation4 [shape = 's32[1]{0}', space=sflag, size = 0x4, scoped, tag = 'scoped memory for tpu_custom_call.1']
    #allocation5 [shape = 'u8[32768]{0}', space=vmem, size = 0x8000, scoped, tag = 'input window, operand 1, single buffered']
    #allocation6 [shape = 's32[1]{0}', space=sflag, size = 0x4, scoped, tag = 'scoped memory for tpu_custom_call.1']
    #allocation7 [shape = 'u8[32768]{0}', space=vmem, size = 0x8000, scoped, tag = 'input window, operand 2, single buffered']
    #allocation8 [shape = 'u8[32768]{0}', space=vmem, size = 0x8000, scoped, tag = 'output window, operand 0, single buffered']
    #allocation9 [shape = 'u8[32768]{0}', space=vmem, size = 0x8000, scoped, tag = 'output window, operand 1, single buffered']
    #allocation10 [shape = 's32[1]{0}', space=sflag, size = 0x4, scoped, tag = 'scoped memory for tpu_custom_call.1']
    %10 = vsyncpa [#allocation3], 0
    %11 = vsyncpa [#allocation6], 0
    %12 = vsyncpa [#allocation4], 0
    %13 = vsyncpa [#allocation10], 0
    // Predicated region
    $region2: #{tpu_custom_call.1} parent=1 // pred_check
      _
    $region3: #{tpu_custom_call.1} parent=1 // pred_check_branch
      %15 = sbr.rel (0) target = $region5
    $region4: #{tpu_custom_call.1} parent=1 // pred_region
      %17 = vsyncadd [#allocation3], 0
      %s18 = sshll.u32 %s0, 4
      %s19 = int_to_ptr.hbm [resolvable:$true] %s18
      %s20 = sshll.u32 [#allocation2], 4
      %s21 = int_to_ptr.vmem [resolvable:$true] %s20
      %26 = dma.hbm_to_vmem [thread:$0]  %s19, 1024, %s21, [#allocation3], 128, 128, 8
    $region5: #{tpu_custom_call.1} parent=1 // pred_fallthru
      _
    // Predicated region
    $region6: #{tpu_custom_call.1} parent=1 // pred_check
      _
    $region7: #{tpu_custom_call.1} parent=1 // pred_check_branch
      %28 = sbr.rel (0) target = $region9
    $region8: #{tpu_custom_call.1} parent=1 // pred_region
      %30 = vsyncadd [#allocation6], 0
      %s31 = sshll.u32 %s1, 4
      %s32 = int_to_ptr.hbm [resolvable:$true] %s31
      %s33 = sshll.u32 [#allocation5], 4
      %s34 = int_to_ptr.vmem [resolvable:$true] %s33
      %39 = dma.hbm_to_vmem [thread:$0]  %s32, 1024, %s34, [#allocation6], 128, 128, 8
    $region9: #{tpu_custom_call.1} parent=1 // pred_fallthru
      _
    // Predicated region
    $region10: #{tpu_custom_call.1} parent=1 // pred_check
      _
    $region11: #{tpu_custom_call.1} parent=1 // pred_check_branch
      %41 = sbr.rel (0) target = $region13
    $region12: #{tpu_custom_call.1} parent=1 // pred_region
      %43 = vsyncadd [#allocation6], 0
      %s44 = sshll.u32 %s2, 4
      %s45 = int_to_ptr.hbm [resolvable:$true] %s44
      %s46 = sshll.u32 [#allocation7], 4
      %s47 = int_to_ptr.vmem [resolvable:$true] %s46
      %52 = dma.hbm_to_vmem [thread:$0]  %s45, 1024, %s47, [#allocation6], 128, 128, 8
    $region13: #{tpu_custom_call.1} parent=1 // pred_fallthru
      _
    // Predicated region
    $region14: #{tpu_custom_call.1} parent=1 // pred_check
      _
    $region15: #{tpu_custom_call.1} parent=1 // pred_check_branch
      %54 = sbr.rel (0) target = $region17
    $region16: #{tpu_custom_call.1} parent=1 // pred_region
      %56 = dma.done [#allocation3], 1024
    $region17: #{tpu_custom_call.1} parent=1 // pred_fallthru
      _
    // Predicated region
    $region18: #{tpu_custom_call.1} parent=1 // pred_check
      _
    $region19: #{tpu_custom_call.1} parent=1 // pred_check_branch
      %58 = sbr.rel (0) target = $region21
    $region20: #{tpu_custom_call.1} parent=1 // pred_region
      %60 = dma.done [#allocation6], 1024
    $region21: #{tpu_custom_call.1} parent=1 // pred_fallthru
      _
    // Predicated region
    $region22: #{tpu_custom_call.1} parent=1 // pred_check
      _
    $region23: #{tpu_custom_call.1} parent=1 // pred_check_branch
      %62 = sbr.rel (0) target = $region25
    $region24: #{tpu_custom_call.1} parent=1 // pred_region
      %64 = dma.done [#allocation6], 1024
    $region25: #{tpu_custom_call.1} parent=1 // pred_fallthru
      _
    loop: start=0, step=1, limit=8
    $region26: #{tpu_custom_call.1} parent=1 // loop_pre_header
      _
    $region27: #{tpu_custom_call.1} parent=1 // loop_header
      %s66 = sphi 0, %s70
      %p67 = scmp.ge.s32.totalorder %s66, 8
    $region28: #{tpu_custom_call.1} parent=1 // loop_header_branch
      %69 = sbr.rel (%p67) target = $region32
    $region29: #{tpu_custom_call.1} parent=1 // loop_body
      %s71 = smul.u32 %s66, 8
      %s72 = scalar_lea.vmem [#allocation2], %s71
      %v73 = vld [vmem:[%s72] sm:$0xff]
      %v74 = vmul.f32 %v73, 0.17677669
      %s75 = scalar_lea.vmem [#allocation5], %s71
      %v76 = vld [vmem:[%s75] sm:$0xff]
      %s77 = scalar_lea.vmem [#allocation7], %s71
      %v78 = vld [vmem:[%s77] sm:$0xff]
      %vm79 = vcmask 261120
      %v81 = vsel %vm79, %v74, 0
      %v84 = vsel %vm79, %v76, 0
      %86 = vmatpush.xpose.msra.mxu0 0.0
      %87 = vmatpush.xpose.msra.mxu0 0.0
      %88 = vmatpush.xpose.msra.mxu0 0.0
      %89 = vmatpush.xpose.msra.mxu0 0.0
      %90 = vmatpush.xpose.msra.mxu0 0.0
      %91 = vmatpush.xpose.msra.mxu0 0.0
      %92 = vmatpush.xpose.msra.mxu0 0.0
      %93 = vmatpush.xpose.msra.mxu0 0.0
      %94 = vmatpush.xpose.msra.mxu0 0.0
      %95 = vmatpush.xpose.msra.mxu0 0.0
      %96 = vmatpush.xpose.msra.mxu0 0.0
      %97 = vmatpush.xpose.msra.mxu0 0.0
      %98 = vmatpush.xpose.msra.mxu0 0.0
      %99 = vmatpush.xpose.msra.mxu0 0.0
      %100 = vmatpush.xpose.msra.mxu0 0.0
      %101 = vmatpush.xpose.msra.mxu0 %v84
      %102 = vmatmul.f32.gmra.mxu0 %v81
      %v103 = vpop.f32.mrf.mxu0
      %v104 = vadd.f32 0.0, %v103
      %105 = vdwg.mxu0
      %vm106 = vcmask 64512
      %v107 = vsel %vm106, %v104, -inf
      %108 = vmax.xlane.f32.xlu0 %v107
      %v109 = vpop.xlane.xlu0 %108
      %v110 = vsub.f32 %v104, %v109
      %v111 = vmul.f32 %v110, 1.442695
      %v112 = vpow.pop %v111
      %v113 = vsel %vm106, %v112, 0.0
      %114 = vadd.xlane.f32.xlu0 %v113
      %v115 = vpop.xlane.xlu0 %114
      %v116 = vrcp.pop %v115
      %v117 = vmul.f32 %v115, %v116
      %v118 = vsub.f32 2.0, %v117
      %v119 = vmul.f32 %v116, %v118
      %v120 = vmul.f32 %v112, %v119
      %v122 = vsel %vm106, %v120, 0
      %124 = vmatpush.msra.mxu0 0.0
      %125 = vmatpush.msra.mxu0 0.0
      %126 = vmatpush.msra.mxu0 0.0
      %127 = vmatpush.msra.mxu0 0.0
      %128 = vmatpush.msra.mxu0 0.0
      %129 = vmatpush.msra.mxu0 0.0
      %130 = vmatpush.msra.mxu0 0.0
      %131 = vmatpush.msra.mxu0 0.0
      %132 = vmatpush.msra.mxu0 0.0
      %133 = vmatpush.msra.mxu0 0.0
      %134 = vmatpush.msra.mxu0 0.0
      %135 = vmatpush.msra.mxu0 0.0
      %136 = vmatpush.msra.mxu0 0.0
      %137 = vmatpush.msra.mxu0 0.0
      %138 = vmatpush.msra.mxu0 0.0
      %139 = vmatpush.msra.mxu0 %v78
      %140 = vmatmul.f32.gmra.mxu0 %v122
      %v141 = vpop.f32.mrf.mxu0
      %v142 = vadd.f32 0.0, %v141
      %143 = vdwg.mxu0
      %s144 = scalar_lea.vmem [#allocation8], %s71
      %145 = vst.msk [vmem:[%s144] sm:$0xff] %vm79, %v142
      %s146 = scalar_lea.vmem [#allocation9], %s71
      %147 = vst.msk [vmem:[%s146] sm:$0xff] %vm106, %v120
    $region30: #{tpu_custom_call.1} parent=1 // loop_footer
      %s70 = sadd.s32 1, %s66
    $region31: #{tpu_custom_call.1} parent=1 // loop_footer_branch
      %65 = sbr.rel target = $region27
    $region32: #{tpu_custom_call.1} parent=1 // loop_exit
      _
    // Predicated region
    $region33: #{tpu_custom_call.1} parent=1 // pred_check
      _
    $region34: #{tpu_custom_call.1} parent=1 // pred_check_branch
      %149 = sbr.rel (0) target = $region36
    $region35: #{tpu_custom_call.1} parent=1 // pred_region
      %151 = vsyncadd [#allocation4], 0
      %s152 = sshll.u32 [#allocation8], 4
      %s153 = int_to_ptr.vmem [resolvable:$true] %s152
      %s154 = sshll.u32 %s3, 4
      %s155 = int_to_ptr.hbm [resolvable:$true] %s154
      %160 = dma.vmem_to_hbm [thread:$0]  %s153, 1024, %s155, [#allocation4], 128, 128, 8
    $region36: #{tpu_custom_call.1} parent=1 // pred_fallthru
      _
    // Predicated region
    $region37: #{tpu_custom_call.1} parent=1 // pred_check
      _
    $region38: #{tpu_custom_call.1} parent=1 // pred_check_branch
      %162 = sbr.rel (0) target = $region40
    $region39: #{tpu_custom_call.1} parent=1 // pred_region
      %164 = vsyncadd [#allocation10], 0
      %s165 = sshll.u32 [#allocation9], 4
      %s166 = int_to_ptr.vmem [resolvable:$true] %s165
      %s167 = sshll.u32 %s4, 4
      %s168 = int_to_ptr.hbm [resolvable:$true] %s167
      %173 = dma.vmem_to_hbm [thread:$0]  %s166, 1024, %s168, [#allocation10], 128, 128, 8
    $region40: #{tpu_custom_call.1} parent=1 // pred_fallthru
      _
    // Predicated region
    $region41: #{tpu_custom_call.1} parent=1 // pred_check
      _
    $region42: #{tpu_custom_call.1} parent=1 // pred_check_branch
      %175 = sbr.rel (0) target = $region44
    $region43: #{tpu_custom_call.1} parent=1 // pred_region
      %177 = dma.done [#allocation4], 1024
    $region44: #{tpu_custom_call.1} parent=1 // pred_fallthru
      _
    // Predicated region
    $region45: #{tpu_custom_call.1} parent=1 // pred_check
      _
    $region46: #{tpu_custom_call.1} parent=1 // pred_check_branch
      %179 = sbr.rel (0) target = $region48
    $region47: #{tpu_custom_call.1} parent=1 // pred_region
      %181 = dma.done [#allocation10], 1024
    $region48: #{tpu_custom_call.1} parent=1 // pred_fallthru
      _
    %182 = vsyncpa [#allocation3], 1
    %183 = vsyncpa [#allocation6], 1
    %184 = vsyncpa [#allocation4], 1
    %185 = vsyncpa [#allocation10], 1

</llo_original>
